<compile_context>
chip_gen: v6e
topology: v6e:2x2x1
jax: 0.10.0
libtpu: 0.0.40
codegen_flags: <defaults>
</compile_context>

<pallas_src>
from functools import partial

import jax
import jax.numpy as jnp
import numpy as np
from jax.experimental import pallas as pl
from jax.experimental.pallas import tpu as pltpu


# ----------------------------- Pallas kernel ------------------------------- #

def selection_score_kernel(x_ref, wlogit_ref, wv_ref, o_ref, *, block_b):
    """ATS selection score for a block of `block_b` batches.

    score[b, n] = (sum_h softmax_n(scale * q_cls_bh . k_bhn)) * ||v_bn||_2

    The wrapper folds `scale * q_cls` into the k weight per head, so per batch we
    only need:  v = x @ w_v  (dominant matmul)  and  logits = x @ W_logit (N, H).
    Matmul operands arrive in compute_dtype (bf16 by default), accumulation and
    all softmax / norm / score math are f32.
    """
    wv = wv_ref[...]                                   # (C, C) resident, single-buffered
    for bi in range(block_b):                          # static unroll; block_b is 1-2
        x = x_ref[bi]                                  # (N, C) compute dtype
        N = x.shape[0]

        # v projection: the only full-size MXU matmul left (f32 accumulate).
        v = jnp.dot(x, wv, preferred_element_type=jnp.float32)                 # (N, C)

        # All-head CLS logits in one small matmul; 1/sqrt(hd) already folded in.
        logits = jnp.dot(x, wlogit_ref[bi], preferred_element_type=jnp.float32)  # (N, H)

        # One softmax over keys (axis 0) for all heads at once, then head-sum.
        logits = logits - jnp.max(logits, axis=0, keepdims=True)
        e = jnp.exp(logits)
        attn = e / jnp.sum(e, axis=0, keepdims=True)   # exact divide: scores feed argsort
        cls_attn = jnp.sum(attn, axis=1, keepdims=True)                         # (N, 1)

        # Per-token L2 norm of v over all channels (head-major channel order is
        # identical to v.transpose(1, 2).reshape(B, N, C) in the PyTorch code).
        v_norm = jnp.sqrt(jnp.sum(v * v, axis=-1, keepdims=True))               # (N, 1)

        sel = cls_attn * v_norm                                                  # (N, 1)
        o_ref[bi] = jnp.reshape(sel, (1, N)).astype(o_ref.dtype)                # row store


def selection_scores_pallas(x, w_logit, w_v, *, block_b):
    B, N, C = x.shape
    H = w_logit.shape[-1]
    assert B % block_b == 0

    # VMEM budget from the actual buffers: single-buffered weight, double-buffered
    # x / w_logit / out blocks, plus f32 intermediate headroom.  32 MiB floor is
    # <= physical on every generation and only raises v5e's 16 MiB scoped default.
    dt = x.dtype.itemsize
    est = (C * C * dt                                  # resident w_v (1 buffer)
           + 2 * block_b * (N * C + C * H) * dt        # pipelined x / w_logit blocks
           + 2 * block_b * N * 4                       # pipelined out blocks (f32)
           + 6 * N * C * 4)                            # in-kernel f32 intermediates
    vmem_limit = int(min(max(2 * est, 32 * 1024 * 1024), 64 * 1024 * 1024))

    out = pl.pallas_call(
        partial(selection_score_kernel, block_b=block_b),
        out_shape=jax.ShapeDtypeStruct((B, 1, N), jnp.float32),
        grid=(B // block_b,),
        in_specs=[
            pl.BlockSpec((block_b, N, C), lambda b: (b, 0, 0)),     # x batch block
            pl.BlockSpec((block_b, C, H), lambda b: (b, 0, 0)),     # folded q.k weight
            pl.BlockSpec((C, C), lambda b: (0, 0),
                         pipeline_mode=pl.Buffered(1)),             # resident w_v
        ],
        out_specs=pl.BlockSpec((block_b, 1, N), lambda b: (b, 0, 0)),
        compiler_params=pltpu.CompilerParams(
            dimension_semantics=("parallel",),
            vmem_limit_bytes=vmem_limit),
    )(x, w_logit, w_v)
    return out[:, 0, :]                                             # (B, N)


# ----------------------------- wrapper (TokenSampling.forward) ------------- #

def token_sampling_pallas(x, n, raw_x, policy, wqkv_t, ys_param, num_heads,
                          compute_dtype=jnp.bfloat16):
    B, N, C = x.shape
    hd = C // num_heads
    scale = hd ** -0.5
    hi = jax.lax.Precision.HIGHEST

    # n handling exactly as in QuerySelector.forward.  The module later overwrites
    # n = norm_cdf.shape[2] + 1 (== N), so n does not change the output shape here.
    if n <= 1.0:
        n = n * N
        if n < 8:
            n = 8
    n = round(n)

    # ---- host-side prep: O(B*C*C*H), ~5% of the kernel's O(B*N*C*C) ----
    w_q = wqkv_t[:, 0:C]
    w_k = wqkv_t[:, C:2 * C]
    w_v = wqkv_t[:, 2 * C:3 * C]
    # Only the CLS row of q is ever consumed downstream: project just x[:, 0] and
    # fold the 1/sqrt(hd) scale in here.
    q_cls = jnp.einsum("bc,cd->bd", x[:, 0, :], w_q, precision=hi) * scale     # (B, C)
    # Fold q_cls into the k weight per head so the kernel never projects k:
    #   logits[b, n, h] = k[b, n, hh] . q_cls[b, hh] = x[b, n, :] @ W_logit[b, :, h]
    w_logit = jnp.einsum("chd,bhd->bch",
                         w_k.reshape(C, num_heads, hd),
                         q_cls.reshape(B, num_heads, hd),
                         precision=hi)                                         # (B, C, H)

    # Batch-block to amortize per-grid-step overhead; 2 keeps the grid megacore-
    # even for typical batch sizes and the VMEM footprint small on v7x.
    block_b = 2 if B % 2 == 0 else 1

    score = selection_scores_pallas(
        x.astype(compute_dtype),
        w_logit.astype(compute_dtype),
        w_v.astype(compute_dtype),
        block_b=block_b)                                   # (B, N) f32

    score = score[:, 1:]                                   # drop CLS token
    score = score / jnp.sum(score, axis=1, keepdims=True)

    M = N - 1
    n = M + 1                                              # overwritten, as in the module

    # --- selection tail in XLA ---
    # TODO(synk): sort / cumsum / argmin / gather have no clean Pallas TPU lowering.
    sorted_ind = jnp.argsort(score, axis=1)                # ascending
    sorted_scores = jnp.take_along_axis(score, sorted_ind, axis=1)
    cdf = jnp.cumsum(sorted_scores, axis=1)
    cdf_min = jnp.min(cdf, axis=1, keepdims=True)
    cdf_max = jnp.max(cdf, axis=1, keepdims=True)
    norm_cdf = (cdf - cdf_min) / (cdf_max - cdf_min)       # (B, M)

    ys = ys_param[:, :M]                                   # (1, M) fixed linspace
    diff = jnp.abs(ys[0][None, :, None] - norm_cdf[:, None, :])    # (B, M, M)
    picks = jnp.argmin(diff, axis=2)                       # (B, M)

    final_ind = jnp.take_along_axis(sorted_ind, picks, axis=1)     # indices into raw_x[:, 1:]
    gathered = jnp.take_along_axis(raw_x[:, 1:], final_ind[:, :, None], axis=1)
    selected_x = jnp.concatenate([raw_x[:, 0:1], gathered], axis=1)   # (B, N, C)

    # TokenSampling: x passes through (proj_drop p=0), masks is None, policy unchanged.
    return x, selected_x, None, policy


# ----------------------------- pure-JAX reference --------------------------- #

def token_sampling_ref(x, n, raw_x, policy, wqkv_t, ys_param, num_heads):
    B, N, C = x.shape
    hd = C // num_heads
    scale = hd ** -0.5
    hi = jax.lax.Precision.HIGHEST

    qkv = jnp.einsum("bnc,cd->bnd", x, wqkv_t, precision=hi)
    qkv = qkv.reshape(B, N, 3, num_heads, hd).transpose(2, 0, 3, 1, 4)   # (3,B,H,N,hd)
    q, k, v = qkv[0], qkv[1], qkv[2]
    attn = jnp.einsum("bhnd,bhmd->bhnm", q, k, precision=hi) * scale
    attn = jax.nn.softmax(attn, axis=-1)

    v_tok = v.transpose(0, 2, 1, 3).reshape(B, N, C)
    v_norm = jnp.sqrt(jnp.sum(v_tok * v_tok, axis=2))
    score = jnp.sum(attn[:, :, 0, :], axis=1) * v_norm          # (B, N)
    score = score[:, 1:]
    score = score / jnp.sum(score, axis=1, keepdims=True)

    M = N - 1
    sorted_ind = jnp.argsort(score, axis=1)
    sorted_scores = jnp.take_along_axis(score, sorted_ind, axis=1)
    cdf = jnp.cumsum(sorted_scores, axis=1)
    norm_cdf = (cdf - jnp.min(cdf, 1, keepdims=True)) / (
        jnp.max(cdf, 1, keepdims=True) - jnp.min(cdf, 1, keepdims=True))
    ys = ys_param[:, :M]
    diff = jnp.abs(ys[0][None, :, None] - norm_cdf[:, None, :])
    picks = jnp.argmin(diff, axis=2)
    final_ind = jnp.take_along_axis(sorted_ind, picks, axis=1)
    gathered = jnp.take_along_axis(raw_x[:, 1:], final_ind[:, :, None], axis=1)
    selected_x = jnp.concatenate([raw_x[:, 0:1], gathered], axis=1)
    return x, selected_x, None, policy


# ----------------------------- main ---------------------------------------- #

if __name__ == "__main__":
    B, N, C, H = 2, 16, 32, 4          # batch, tokens (incl. CLS), dim, heads (hd=8)
    key = jax.random.PRNGKey(0)
    kx, kr, kw = jax.random.split(key, 3)

    x = jax.random.normal(kx, (B, N, C), jnp.float32)
    raw_x = jax.random.normal(kr, (B, N, C), jnp.float32)
    wqkv_t = jax.random.normal(kw, (C, 3 * C), jnp.float32) * 0.05   # qkv weight^T, no bias
    # QuerySelector.ys parameter: linspace(0, 1, 196), sliced to N-1 inside forward.
    ys_param = jnp.linspace(0.0, 1.0, 196, dtype=jnp.float32).reshape(1, 196)
    n = 0.5                             # keep-rate; module clamps/rounds then overwrites

    # f32-operand path: checked token-exact against the pure-JAX reference
    # (the discrete argsort/argmin selection requires matching indices).
    out_x, selected, masks, policy_out = token_sampling_pallas(
        x, n, raw_x, None, wqkv_t, ys_param, H, compute_dtype=jnp.float32)
    jax.block_until_ready(selected)

    ref_x, ref_sel, ref_masks, ref_policy = token_sampling_ref(
        x, n, raw_x, None, wqkv_t, ys_param, H)

    np.testing.assert_allclose(np.asarray(out_x), np.asarray(ref_x),
                               rtol=1e-6, atol=1e-6)
    np.testing.assert_allclose(np.asarray(selected), np.asarray(ref_sel),
                               rtol=1e-4, atol=1e-4)
    assert masks is None and ref_masks is None
    assert policy_out is None and ref_policy is None

    # bf16-operand production default (f32 accumulate): run + block to verify the
    # fast path compiles; its validation metric is selection agreement, not
    # allclose, since near-equal scores may legitimately reorder under bf16.
    _, selected_bf16, _, _ = token_sampling_pallas(
        x, n, raw_x, None, wqkv_t, ys_param, H)
    jax.block_until_ready(selected_bf16)

    print("KERNEL_OK")
</pallas_src>

<mosaic_0001>
module attributes {stable_mosaic.version = 11 : i64} {
  func.func @selection_score_kernel(%arg0: i32, %arg1: memref<2x16x32xf32, #tpu.memory_space<vmem>>, %arg2: memref<2x32x4xf32, #tpu.memory_space<vmem>>, %arg3: memref<32x32xf32, #tpu.memory_space<vmem>>, %arg4: memref<2x1x16xf32, #tpu.memory_space<vmem>>) attributes {dimension_semantics = [#tpu.dimension_semantics<parallel>], iteration_bounds = array<i64: 1>, scalar_prefetch = 0 : i64, scratch_operands = 0 : i64, tpu.core_type = #tpu.core_type<tc>, window_params = [{transform_indices = @transform_0, window_bounds = array<i64: 2, 16, 32>}, {transform_indices = @transform_1, window_bounds = array<i64: 2, 32, 4>}, {pipeline_mode = #tpu.pipeline_mode<synchronous>, transform_indices = @transform_2, window_bounds = array<i64: 32, 32>}, {transform_indices = @transform_3, window_bounds = array<i64: 2, 1, 16>}]} {
    %c0 = arith.constant 0 : index
    %c0_0 = arith.constant 0 : index
    %0 = vector.load %arg3[%c0, %c0_0] : memref<32x32xf32, #tpu.memory_space<vmem>>, vector<32x32xf32>
    %c0_1 = arith.constant 0 : index
    %c0_2 = arith.constant 0 : index
    %c0_3 = arith.constant 0 : index
    %1 = vector.load %arg1[%c0_1, %c0_2, %c0_3] : memref<2x16x32xf32, #tpu.memory_space<vmem>>, vector<1x16x32xf32>
    %2 = vector.shape_cast %1 : vector<1x16x32xf32> to vector<16x32xf32>
    %cst = arith.constant dense<0.000000e+00> : vector<16x32xf32>
    %3 = tpu.matmul %2, %0, %cst {dimension_numbers = #tpu.dot_dimension_numbers<[1], [0], [0], [1], [0, 0, 1, 1], [], []>} : vector<16x32xf32>, vector<32x32xf32>, vector<16x32xf32> -> vector<16x32xf32>
    %c0_4 = arith.constant 0 : index
    %c0_5 = arith.constant 0 : index
    %c0_6 = arith.constant 0 : index
    %4 = vector.load %arg2[%c0_4, %c0_5, %c0_6] : memref<2x32x4xf32, #tpu.memory_space<vmem>>, vector<1x32x4xf32>
    %5 = vector.shape_cast %4 : vector<1x32x4xf32> to vector<32x4xf32>
    %cst_7 = arith.constant dense<0.000000e+00> : vector<16x4xf32>
    %6 = tpu.matmul %2, %5, %cst_7 {dimension_numbers = #tpu.dot_dimension_numbers<[1], [0], [0], [1], [0, 0, 1, 1], [], []>} : vector<16x32xf32>, vector<32x4xf32>, vector<16x4xf32> -> vector<16x4xf32>
    %cst_8 = arith.constant dense<0xFF800000> : vector<4xf32>
    %7 = vector.multi_reduction <maximumf>, %6, %cst_8 [0] : vector<16x4xf32> to vector<4xf32>
    %8 = vector.shape_cast %7 : vector<4xf32> to vector<1x4xf32>
    %9 = vector.broadcast %8 : vector<1x4xf32> to vector<16x4xf32>
    %10 = arith.subf %6, %9 : vector<16x4xf32>
    %11 = math.exp %10 : vector<16x4xf32>
    %cst_9 = arith.constant dense<0.000000e+00> : vector<4xf32>
    %12 = vector.multi_reduction <add>, %11, %cst_9 [0] : vector<16x4xf32> to vector<4xf32>
    %13 = vector.shape_cast %12 : vector<4xf32> to vector<1x4xf32>
    %14 = vector.broadcast %13 : vector<1x4xf32> to vector<16x4xf32>
    %15 = arith.divf %11, %14 : vector<16x4xf32>
    %cst_10 = arith.constant dense<0.000000e+00> : vector<16xf32>
    %16 = vector.multi_reduction <add>, %15, %cst_10 [1] : vector<16x4xf32> to vector<16xf32>
    %17 = vector.shape_cast %16 : vector<16xf32> to vector<16x1xf32>
    %18 = arith.mulf %3, %3 : vector<16x32xf32>
    %cst_11 = arith.constant dense<0.000000e+00> : vector<16xf32>
    %19 = vector.multi_reduction <add>, %18, %cst_11 [1] : vector<16x32xf32> to vector<16xf32>
    %20 = vector.shape_cast %19 : vector<16xf32> to vector<16x1xf32>
    %21 = math.sqrt %20 : vector<16x1xf32>
    %22 = arith.mulf %17, %21 : vector<16x1xf32>
    %23 = vector.shape_cast %22 : vector<16x1xf32> to vector<1x16xf32>
    %c0_12 = arith.constant 0 : index
    %c0_13 = arith.constant 0 : index
    %c0_14 = arith.constant 0 : index
    %24 = vector.load %arg4[%c0_12, %c0_13, %c0_14] : memref<2x1x16xf32, #tpu.memory_space<vmem>>, vector<1x1x16xf32>
    %25 = vector.shape_cast %24 : vector<1x1x16xf32> to vector<1x16xf32>
    %26 = vector.shape_cast %23 : vector<1x16xf32> to vector<1x1x16xf32>
    tpu.vector_store %arg4[%c0_12, %c0_13, %c0_14], %26 {strides = array<i32>} : memref<2x1x16xf32, #tpu.memory_space<vmem>>, vector<1x1x16xf32>,
    %c1 = arith.constant 1 : index
    %c0_15 = arith.constant 0 : index
    %c0_16 = arith.constant 0 : index
    %27 = vector.load %arg1[%c1, %c0_15, %c0_16] : memref<2x16x32xf32, #tpu.memory_space<vmem>>, vector<1x16x32xf32>
    %28 = vector.shape_cast %27 : vector<1x16x32xf32> to vector<16x32xf32>
    %cst_17 = arith.constant dense<0.000000e+00> : vector<16x32xf32>
    %29 = tpu.matmul %28, %0, %cst_17 {dimension_numbers = #tpu.dot_dimension_numbers<[1], [0], [0], [1], [0, 0, 1, 1], [], []>} : vector<16x32xf32>, vector<32x32xf32>, vector<16x32xf32> -> vector<16x32xf32>
    %c1_18 = arith.constant 1 : index
    %c0_19 = arith.constant 0 : index
    %c0_20 = arith.constant 0 : index
    %30 = vector.load %arg2[%c1_18, %c0_19, %c0_20] : memref<2x32x4xf32, #tpu.memory_space<vmem>>, vector<1x32x4xf32>
    %31 = vector.shape_cast %30 : vector<1x32x4xf32> to vector<32x4xf32>
    %cst_21 = arith.constant dense<0.000000e+00> : vector<16x4xf32>
    %32 = tpu.matmul %28, %31, %cst_21 {dimension_numbers = #tpu.dot_dimension_numbers<[1], [0], [0], [1], [0, 0, 1, 1], [], []>} : vector<16x32xf32>, vector<32x4xf32>, vector<16x4xf32> -> vector<16x4xf32>
    %cst_22 = arith.constant dense<0xFF800000> : vector<4xf32>
    %33 = vector.multi_reduction <maximumf>, %32, %cst_22 [0] : vector<16x4xf32> to vector<4xf32>
    %34 = vector.shape_cast %33 : vector<4xf32> to vector<1x4xf32>
    %35 = vector.broadcast %34 : vector<1x4xf32> to vector<16x4xf32>
    %36 = arith.subf %32, %35 : vector<16x4xf32>
    %37 = math.exp %36 : vector<16x4xf32>
    %cst_23 = arith.constant dense<0.000000e+00> : vector<4xf32>
    %38 = vector.multi_reduction <add>, %37, %cst_23 [0] : vector<16x4xf32> to vector<4xf32>
    %39 = vector.shape_cast %38 : vector<4xf32> to vector<1x4xf32>
    %40 = vector.broadcast %39 : vector<1x4xf32> to vector<16x4xf32>
    %41 = arith.divf %37, %40 : vector<16x4xf32>
    %cst_24 = arith.constant dense<0.000000e+00> : vector<16xf32>
    %42 = vector.multi_reduction <add>, %41, %cst_24 [1] : vector<16x4xf32> to vector<16xf32>
    %43 = vector.shape_cast %42 : vector<16xf32> to vector<16x1xf32>
    %44 = arith.mulf %29, %29 : vector<16x32xf32>
    %cst_25 = arith.constant dense<0.000000e+00> : vector<16xf32>
    %45 = vector.multi_reduction <add>, %44, %cst_25 [1] : vector<16x32xf32> to vector<16xf32>
    %46 = vector.shape_cast %45 : vector<16xf32> to vector<16x1xf32>
    %47 = math.sqrt %46 : vector<16x1xf32>
    %48 = arith.mulf %43, %47 : vector<16x1xf32>
    %49 = vector.shape_cast %48 : vector<16x1xf32> to vector<1x16xf32>
    %c1_26 = arith.constant 1 : index
    %c0_27 = arith.constant 0 : index
    %c0_28 = arith.constant 0 : index
    %50 = vector.load %arg4[%c1_26, %c0_27, %c0_28] : memref<2x1x16xf32, #tpu.memory_space<vmem>>, vector<1x1x16xf32>
    %51 = vector.shape_cast %50 : vector<1x1x16xf32> to vector<1x16xf32>
    %52 = vector.shape_cast %49 : vector<1x16xf32> to vector<1x1x16xf32>
    tpu.vector_store %arg4[%c1_26, %c0_27, %c0_28], %52 {strides = array<i32>} : memref<2x1x16xf32, #tpu.memory_space<vmem>>, vector<1x1x16xf32>,
    return
  }
  func.func @transform_0(%arg0: i32) -> (i32, i32, i32) {
    %c0_i32 = arith.constant 0 : i32
    %c0_i32_0 = arith.constant 0 : i32
    %c0_i32_1 = arith.constant 0 : i32
    return %arg0, %c0_i32, %c0_i32_0 : i32, i32, i32
  }
  func.func @transform_1(%arg0: i32) -> (i32, i32, i32) {
    %c0_i32 = arith.constant 0 : i32
    %c0_i32_0 = arith.constant 0 : i32
    %c0_i32_1 = arith.constant 0 : i32
    return %arg0, %c0_i32, %c0_i32_0 : i32, i32, i32
  }
  func.func @transform_2(%arg0: i32) -> (i32, i32) {
    %c0_i32 = arith.constant 0 : i32
    %c0_i32_0 = arith.constant 0 : i32
    %c0_i32_1 = arith.constant 0 : i32
    return %c0_i32, %c0_i32_0 : i32, i32
  }
  func.func @transform_3(%arg0: i32) -> (i32, i32, i32) {
    %c0_i32 = arith.constant 0 : i32
    %c0_i32_0 = arith.constant 0 : i32
    %c0_i32_1 = arith.constant 0 : i32
    return %arg0, %c0_i32, %c0_i32_0 : i32, i32, i32
  }
}

</mosaic_0001>

<llo_original>
// kernel: tpu_custom_call.1
$region0: #{tpu_custom_call.1}
  #allocation0 [shape = 'u32[]', space=smem, size = 0x4, offset = 0x4, fixed_abs, tag = 'smem constant byte address 0x4 - core index']
  #allocation1 [shape = 'u32[144,128]{1,0:T(1,128)}', space=vmem, size = 0x12000, scoped, tag = 'internal scratch']
  %s0 = inlined_call_operand.vmem [shape: f32[2,16,32], index: 0, kind: input, shape index: {}]
  %s1 = inlined_call_operand.vmem [shape: f32[2,32,4], index: 1, kind: input, shape index: {}]
  %s2 = inlined_call_operand.vmem [shape: f32[32,32], index: 2, kind: input, shape index: {}]
  %s3 = inlined_call_operand.hbm [shape: f32[2,1,16], index: 3, kind: output, shape index: {}]
  %s4 = sld [smem:[#allocation0]]
  $region22: #{tpu_custom_call.1} parent=0
    _
  %s6 = ssub.s32 1, %s4
  %s7 = scalar_select 0, %s6, %s4
  $region1: #{tpu_custom_call.1} parent=0
    #allocation2 [shape = 'u8[1024]{0}', space=vmem, size = 0x400, scoped, tag = 'output window, operand 0, single buffered']
    #allocation3 [shape = 's32[1]{0}', space=sflag, size = 0x4, scoped, tag = 'scoped memory for tpu_custom_call.1']
    %8 = vsyncpa [#allocation3], 0
    // Predicated region
    $region2: #{tpu_custom_call.1} parent=1 // pred_check
      _
    $region3: #{tpu_custom_call.1} parent=1 // pred_check_branch
      %10 = sbr.rel (0) target = $region5
    $region4: #{tpu_custom_call.1} parent=1 // pred_region
      _
    $region5: #{tpu_custom_call.1} parent=1 // pred_fallthru
      _
    // Predicated region
    $region6: #{tpu_custom_call.1} parent=1 // pred_check
      _
    $region7: #{tpu_custom_call.1} parent=1 // pred_check_branch
      %12 = sbr.rel (0) target = $region9
    $region8: #{tpu_custom_call.1} parent=1 // pred_region
      _
    $region9: #{tpu_custom_call.1} parent=1 // pred_fallthru
      _
    // Predicated region
    $region10: #{tpu_custom_call.1} parent=1 // pred_check
      _
    $region11: #{tpu_custom_call.1} parent=1 // pred_check_branch
      %14 = sbr.rel (0) target = $region13
    $region12: #{tpu_custom_call.1} parent=1 // pred_region
      _
    $region13: #{tpu_custom_call.1} parent=1 // pred_fallthru
      _
    %v15 = vld [vmem:[%s2] sm:$0xff]
    %v16 = vld [vmem:[%s2 + $0x8] sm:$0xff]
    %v17 = vld [vmem:[%s2 + $0x10] sm:$0xff]
    %v18 = vld [vmem:[%s2 + $0x18] sm:$0xff]
    %v19 = vld [vmem:[%s0] sm:$0xff]
    %v20 = vld [vmem:[%s0 + $0x8] sm:$0xff]
    %vm21 = vcmask 261120
    %v23 = vsel %vm21, %v19, 0
    %v26 = vsel %vm21, %v20, 0
    %28 = vmatprep.subr.mxu0 0.0
    %29 = vmatpush1.msra.mxu0 0.0
    %30 = vmatprep.subr.mxu0 0.0
    %31 = vmatpush1.msra.mxu0 0.0
    %32 = vmatprep.subr.mxu0 0.0
    %33 = vmatpush1.msra.mxu0 0.0
    %34 = vmatprep.subr.mxu0 0.0
    %35 = vmatpush1.msra.mxu0 0.0
    %36 = vmatprep.subr.mxu0 0.0
    %37 = vmatpush1.msra.mxu0 0.0
    %38 = vmatprep.subr.mxu0 0.0
    %39 = vmatpush1.msra.mxu0 0.0
    %40 = vmatprep.subr.mxu0 0.0
    %41 = vmatpush1.msra.mxu0 0.0
    %42 = vmatprep.subr.mxu0 0.0
    %43 = vmatpush1.msra.mxu0 0.0
    %44 = vmatprep.subr.mxu0 0.0
    %45 = vmatpush1.msra.mxu0 0.0
    %46 = vmatprep.subr.mxu0 0.0
    %47 = vmatpush1.msra.mxu0 0.0
    %48 = vmatprep.subr.mxu0 0.0
    %49 = vmatpush1.msra.mxu0 0.0
    %50 = vmatprep.subr.mxu0 0.0
    %51 = vmatpush1.msra.mxu0 0.0
    %52 = vmatprep.subr.mxu0 0.0
    %53 = vmatpush1.msra.mxu0 %v18
    %54 = vmatprep.subr.mxu0 0.0
    %55 = vmatpush1.msra.mxu0 %v17
    %56 = vmatprep.subr.mxu0 0.0
    %57 = vmatpush1.msra.mxu0 %v16
    %58 = vmatprep.subr.mxu0 0.0
    %59 = vmatpush1.msra.mxu0 %v15
    %60 = vmatprep.subr.mxu0 0.0
    %61 = vmatpush2.msra.mxu0 0.0
    %62 = vmatprep.subr.mxu0 0.0
    %63 = vmatpush2.msra.mxu0 0.0
    %64 = vmatprep.subr.mxu0 0.0
    %65 = vmatpush2.msra.mxu0 0.0
    %66 = vmatprep.subr.mxu0 0.0
    %67 = vmatpush2.msra.mxu0 0.0
    %68 = vmatprep.subr.mxu0 0.0
    %69 = vmatpush2.msra.mxu0 0.0
    %70 = vmatprep.subr.mxu0 0.0
    %71 = vmatpush2.msra.mxu0 0.0
    %72 = vmatprep.subr.mxu0 0.0
    %73 = vmatpush2.msra.mxu0 0.0
    %74 = vmatprep.subr.mxu0 0.0
    %75 = vmatpush2.msra.mxu0 0.0
    %76 = vmatprep.subr.mxu0 0.0
    %77 = vmatpush2.msra.mxu0 0.0
    %78 = vmatprep.subr.mxu0 0.0
    %79 = vmatpush2.msra.mxu0 0.0
    %80 = vmatprep.subr.mxu0 0.0
    %81 = vmatpush2.msra.mxu0 0.0
    %82 = vmatprep.subr.mxu0 0.0
    %83 = vmatpush2.msra.mxu0 0.0
    %84 = vmatprep.subr.mxu0 0.0
    %85 = vmatpush2.msra.mxu0 0.0
    %86 = vmatprep.subr.mxu0 0.0
    %87 = vmatpush2.msra.mxu0 0.0
    %88 = vmatprep.subr.mxu0 0.0
    %89 = vmatpush2.msra.mxu0 0.0
    %90 = vmatprep.subr.mxu0 0.0
    %91 = vmatpush2.msra.mxu0 0.0
    %92 = vmatprep.mubr.f32.mxu0 0.0
    %93 = vmatmul.mubr.f32.gmra.mxu0 %v23
    %v94 = vpop.f32.mrf.mxu0
    %v95 = vadd.f32 0.0, %v94
    %v96 = vpop.f32.mrf.mxu0
    %97 = vmatprep.mubr.f32.mxu0 0.0
    %98 = vmatmul.mubr.f32.gmra.mxu0 %v26
    %v99 = vpop.f32.mrf.mxu0
    %v100 = vadd.f32 0.0, %v99
    %v101 = vpop.f32.mrf.mxu0
    %102 = vdwg.mxu0
    %v103 = vld [vmem:[%s1] sm:$0xff]
    %v104 = vld [vmem:[%s1 + $0x8] sm:$0xff]
    %v105 = vld [vmem:[%s1 + $0x10] sm:$0xff]
    %v106 = vld [vmem:[%s1 + $0x18] sm:$0xff]
    %107 = vmatprep.subr.mxu0 0.0
    %108 = vmatpush1.msra.mxu0 0.0
    %109 = vmatprep.subr.mxu0 0.0
    %110 = vmatpush1.msra.mxu0 0.0
    %111 = vmatprep.subr.mxu0 0.0
    %112 = vmatpush1.msra.mxu0 0.0
    %113 = vmatprep.subr.mxu0 0.0
    %114 = vmatpush1.msra.mxu0 0.0
    %115 = vmatprep.subr.mxu0 0.0
    %116 = vmatpush1.msra.mxu0 0.0
    %117 = vmatprep.subr.mxu0 0.0
    %118 = vmatpush1.msra.mxu0 0.0
    %119 = vmatprep.subr.mxu0 0.0
    %120 = vmatpush1.msra.mxu0 0.0
    %121 = vmatprep.subr.mxu0 0.0
    %122 = vmatpush1.msra.mxu0 0.0
    %123 = vmatprep.subr.mxu0 0.0
    %124 = vmatpush1.msra.mxu0 0.0
    %125 = vmatprep.subr.mxu0 0.0
    %126 = vmatpush1.msra.mxu0 0.0
    %127 = vmatprep.subr.mxu0 0.0
    %128 = vmatpush1.msra.mxu0 0.0
    %129 = vmatprep.subr.mxu0 0.0
    %130 = vmatpush1.msra.mxu0 0.0
    %131 = vmatprep.subr.mxu0 0.0
    %132 = vmatpush1.msra.mxu0 %v106
    %133 = vmatprep.subr.mxu0 0.0
    %134 = vmatpush1.msra.mxu0 %v105
    %135 = vmatprep.subr.mxu0 0.0
    %136 = vmatpush1.msra.mxu0 %v104
    %137 = vmatprep.subr.mxu0 0.0
    %138 = vmatpush1.msra.mxu0 %v103
    %139 = vmatprep.subr.mxu0 0.0
    %140 = vmatpush2.msra.mxu0 0.0
    %141 = vmatprep.subr.mxu0 0.0
    %142 = vmatpush2.msra.mxu0 0.0
    %143 = vmatprep.subr.mxu0 0.0
    %144 = vmatpush2.msra.mxu0 0.0
    %145 = vmatprep.subr.mxu0 0.0
    %146 = vmatpush2.msra.mxu0 0.0
    %147 = vmatprep.subr.mxu0 0.0
    %148 = vmatpush2.msra.mxu0 0.0
    %149 = vmatprep.subr.mxu0 0.0
    %150 = vmatpush2.msra.mxu0 0.0
    %151 = vmatprep.subr.mxu0 0.0
    %152 = vmatpush2.msra.mxu0 0.0
    %153 = vmatprep.subr.mxu0 0.0
    %154 = vmatpush2.msra.mxu0 0.0
    %155 = vmatprep.subr.mxu0 0.0
    %156 = vmatpush2.msra.mxu0 0.0
    %157 = vmatprep.subr.mxu0 0.0
    %158 = vmatpush2.msra.mxu0 0.0
    %159 = vmatprep.subr.mxu0 0.0
    %160 = vmatpush2.msra.mxu0 0.0
    %161 = vmatprep.subr.mxu0 0.0
    %162 = vmatpush2.msra.mxu0 0.0
    %163 = vmatprep.subr.mxu0 0.0
    %164 = vmatpush2.msra.mxu0 0.0
    %165 = vmatprep.subr.mxu0 0.0
    %166 = vmatpush2.msra.mxu0 0.0
    %167 = vmatprep.subr.mxu0 0.0
    %168 = vmatpush2.msra.mxu0 0.0
    %169 = vmatprep.subr.mxu0 0.0
    %170 = vmatpush2.msra.mxu0 0.0
    %171 = vmatprep.mubr.f32.mxu0 0.0
    %172 = vmatmul.mubr.f32.gmra.mxu0 %v23
    %v173 = vpop.f32.mrf.mxu0
    %v174 = vadd.f32 0.0, %v173
    %v175 = vpop.f32.mrf.mxu0
    %176 = vmatprep.mubr.f32.mxu0 0.0
    %177 = vmatmul.mubr.f32.gmra.mxu0 %v26
    %v178 = vpop.f32.mrf.mxu0
    %v179 = vadd.f32 0.0, %v178
    %v180 = vpop.f32.mrf.mxu0
    %181 = vdwg.mxu0
    %vm182 = vcmask 31744
    %v183 = vsel %vm182, %v174, -inf
    %v184 = vsel %vm182, %v179, -inf
    %v185 = vmax.f32 %v183, %v184
    %v186 = vrot.slane %v185, 4
    %v187 = vmax.f32 %v185, %v186
    %v188 = vrot.slane %v187, 2
    %v189 = vmax.f32 %v187, %v188
    %v190 = vrot.slane %v189, 1
    %v191 = vmax.f32 %v189, %v190
    %v192 = vsub.f32 %v174, %v191
    %v193 = vsub.f32 %v179, %v191
    %v194 = vmul.f32 %v192, 1.442695
    %v195 = vpow.pop %v194
    %v196 = vmul.f32 %v193, 1.442695
    %v197 = vpow.pop %v196
    %v198 = vsel %vm182, %v195, 0.0
    %v199 = vsel %vm182, %v197, 0.0
    %v200 = vadd.f32 %v198, %v199
    %v201 = vrot.slane %v200, 4
    %v202 = vadd.f32 %v200, %v201
    %v203 = vrot.slane %v202, 2
    %v204 = vadd.f32 %v202, %v203
    %v205 = vrot.slane %v204, 1
    %v206 = vadd.f32 %v204, %v205
    %v207 = vrcp.pop %v206
    %v208 = vmul.f32 %v195, %v207
    %v209 = vmul.f32 %v197, %v207
    %v210 = vsel %vm182, %v208, 0.0
    %211 = vadd.xlane.f32.xlu0 %v210
    %v212 = vpop.xlane.xlu0 %211
    %v213 = vsel %vm182, %v209, 0.0
    %214 = vadd.xlane.f32.xlu0 %v213
    %v215 = vpop.xlane.xlu0 %214
    %v216 = vmul.f32 %v95, %v95
    %v217 = vmul.f32 %v100, %v100
    %v218 = vsel %vm21, %v216, 0.0
    %219 = vadd.xlane.f32.xlu0 %v218
    %v220 = vpop.xlane.xlu0 %219
    %v221 = vsel %vm21, %v217, 0.0
    %222 = vadd.xlane.f32.xlu0 %v221
    %v223 = vpop.xlane.xlu0 %222
    %v224 = vrsqrt.pop %v220
    %v225 = vmul.f32 %v220, %v224
    %vm226 = vcmp.eq.f32.partialorder %v220, inf
    %v227 = vsel %vm226, %v220, %v225
    %vm228 = vcmp.eq.f32.partialorder %v220, 0.0
    %v229 = vand.u32 %v220, 2147483648
    %v230 = vsel %vm228, %v229, %v227
    %v231 = vrsqrt.pop %v223
    %v232 = vmul.f32 %v223, %v231
    %vm233 = vcmp.eq.f32.partialorder %v223, inf
    %v234 = vsel %vm233, %v223, %v232
    %vm235 = vcmp.eq.f32.partialorder %v223, 0.0
    %v236 = vand.u32 %v223, 2147483648
    %v237 = vsel %vm235, %v236, %v234
    %v238 = vmul.f32 %v212, %v230
    %v239 = vmul.f32 %v215, %v237
    %v242 = vlaneseq
    %v243 = vand.u32 %v242, 127
    %v244 = vlaneseq
    %v245 = vshrl.u32 %v244, 7
    %v246 = vsub.s32 %v243, %v245
    %v247 = vrot.slane %v238, %v246
    %v248 = vadd.s32 %v243, 4294967288
    %v249 = vlaneseq
    %v250 = vshrl.u32 %v249, 7
    %v251 = vsub.s32 %v248, %v250
    %v252 = vrot.slane %v239, %v251
    %vm253 = vcmask 130112
    %v254 = vsel %vm253, %v252, %v247
    %vm256 = vcmask 122880
    %257 = vst.msk [vmem:[#allocation2] sm:$0x1] %vm256, %v254
    %s258 = scalar_lea.vmem %s0, 16
    %v259 = vld [vmem:[%s258] sm:$0xff]
    %v260 = vld [vmem:[%s258 + $0x8] sm:$0xff]
    %v262 = vsel %vm21, %v259, 0
    %v265 = vsel %vm21, %v260, 0
    %267 = vmatprep.subr.mxu0 0.0
    %268 = vmatpush1.msra.mxu0 0.0
    %269 = vmatprep.subr.mxu0 0.0
    %270 = vmatpush1.msra.mxu0 0.0
    %271 = vmatprep.subr.mxu0 0.0
    %272 = vmatpush1.msra.mxu0 0.0
    %273 = vmatprep.subr.mxu0 0.0
    %274 = vmatpush1.msra.mxu0 0.0
    %275 = vmatprep.subr.mxu0 0.0
    %276 = vmatpush1.msra.mxu0 0.0
    %277 = vmatprep.subr.mxu0 0.0
    %278 = vmatpush1.msra.mxu0 0.0
    %279 = vmatprep.subr.mxu0 0.0
    %280 = vmatpush1.msra.mxu0 0.0
    %281 = vmatprep.subr.mxu0 0.0
    %282 = vmatpush1.msra.mxu0 0.0
    %283 = vmatprep.subr.mxu0 0.0
    %284 = vmatpush1.msra.mxu0 0.0
    %285 = vmatprep.subr.mxu0 0.0
    %286 = vmatpush1.msra.mxu0 0.0
    %287 = vmatprep.subr.mxu0 0.0
    %288 = vmatpush1.msra.mxu0 0.0
    %289 = vmatprep.subr.mxu0 0.0
    %290 = vmatpush1.msra.mxu0 0.0
    %291 = vmatprep.subr.mxu0 0.0
    %292 = vmatpush1.msra.mxu0 %v18
    %293 = vmatprep.subr.mxu0 0.0
    %294 = vmatpush1.msra.mxu0 %v17
    %295 = vmatprep.subr.mxu0 0.0
    %296 = vmatpush1.msra.mxu0 %v16
    %297 = vmatprep.subr.mxu0 0.0
    %298 = vmatpush1.msra.mxu0 %v15
    %299 = vmatprep.subr.mxu0 0.0
    %300 = vmatpush2.msra.mxu0 0.0
    %301 = vmatprep.subr.mxu0 0.0
    %302 = vmatpush2.msra.mxu0 0.0
    %303 = vmatprep.subr.mxu0 0.0
    %304 = vmatpush2.msra.mxu0 0.0
    %305 = vmatprep.subr.mxu0 0.0
    %306 = vmatpush2.msra.mxu0 0.0
    %307 = vmatprep.subr.mxu0 0.0
    %308 = vmatpush2.msra.mxu0 0.0
    %309 = vmatprep.subr.mxu0 0.0
    %310 = vmatpush2.msra.mxu0 0.0
    %311 = vmatprep.subr.mxu0 0.0
    %312 = vmatpush2.msra.mxu0 0.0
    %313 = vmatprep.subr.mxu0 0.0
    %314 = vmatpush2.msra.mxu0 0.0
    %315 = vmatprep.subr.mxu0 0.0
    %316 = vmatpush2.msra.mxu0 0.0
    %317 = vmatprep.subr.mxu0 0.0
    %318 = vmatpush2.msra.mxu0 0.0
    %319 = vmatprep.subr.mxu0 0.0
    %320 = vmatpush2.msra.mxu0 0.0
    %321 = vmatprep.subr.mxu0 0.0
    %322 = vmatpush2.msra.mxu0 0.0
    %323 = vmatprep.subr.mxu0 0.0
    %324 = vmatpush2.msra.mxu0 0.0
    %325 = vmatprep.subr.mxu0 0.0
    %326 = vmatpush2.msra.mxu0 0.0
    %327 = vmatprep.subr.mxu0 0.0
    %328 = vmatpush2.msra.mxu0 0.0
    %329 = vmatprep.subr.mxu0 0.0
    %330 = vmatpush2.msra.mxu0 0.0
    %331 = vmatprep.mubr.f32.mxu0 0.0
    %332 = vmatmul.mubr.f32.gmra.mxu0 %v262
    %v333 = vpop.f32.mrf.mxu0
    %v334 = vadd.f32 0.0, %v333
    %v335 = vpop.f32.mrf.mxu0
    %336 = vmatprep.mubr.f32.mxu0 0.0
    %337 = vmatmul.mubr.f32.gmra.mxu0 %v265
    %v338 = vpop.f32.mrf.mxu0
    %v339 = vadd.f32 0.0, %v338
    %v340 = vpop.f32.mrf.mxu0
    %341 = vdwg.mxu0
    %s342 = scalar_lea.vmem %s1, 32
    %v343 = vld [vmem:[%s342] sm:$0xff]
    %v344 = vld [vmem:[%s342 + $0x8] sm:$0xff]
    %v345 = vld [vmem:[%s342 + $0x10] sm:$0xff]
    %v346 = vld [vmem:[%s342 + $0x18] sm:$0xff]
    %347 = vmatprep.subr.mxu0 0.0
    %348 = vmatpush1.msra.mxu0 0.0
    %349 = vmatprep.subr.mxu0 0.0
    %350 = vmatpush1.msra.mxu0 0.0
    %351 = vmatprep.subr.mxu0 0.0
    %352 = vmatpush1.msra.mxu0 0.0
    %353 = vmatprep.subr.mxu0 0.0
    %354 = vmatpush1.msra.mxu0 0.0
    %355 = vmatprep.subr.mxu0 0.0
    %356 = vmatpush1.msra.mxu0 0.0
    %357 = vmatprep.subr.mxu0 0.0
    %358 = vmatpush1.msra.mxu0 0.0
    %359 = vmatprep.subr.mxu0 0.0
    %360 = vmatpush1.msra.mxu0 0.0
    %361 = vmatprep.subr.mxu0 0.0
    %362 = vmatpush1.msra.mxu0 0.0
    %363 = vmatprep.subr.mxu0 0.0
    %364 = vmatpush1.msra.mxu0 0.0
    %365 = vmatprep.subr.mxu0 0.0
    %366 = vmatpush1.msra.mxu0 0.0
    %367 = vmatprep.subr.mxu0 0.0
    %368 = vmatpush1.msra.mxu0 0.0
    %369 = vmatprep.subr.mxu0 0.0
    %370 = vmatpush1.msra.mxu0 0.0
    %371 = vmatprep.subr.mxu0 0.0
    %372 = vmatpush1.msra.mxu0 %v346
    %373 = vmatprep.subr.mxu0 0.0
    %374 = vmatpush1.msra.mxu0 %v345
    %375 = vmatprep.subr.mxu0 0.0
    %376 = vmatpush1.msra.mxu0 %v344
    %377 = vmatprep.subr.mxu0 0.0
    %378 = vmatpush1.msra.mxu0 %v343
    %379 = vmatprep.subr.mxu0 0.0
    %380 = vmatpush2.msra.mxu0 0.0
    %381 = vmatprep.subr.mxu0 0.0
    %382 = vmatpush2.msra.mxu0 0.0
    %383 = vmatprep.subr.mxu0 0.0
    %384 = vmatpush2.msra.mxu0 0.0
    %385 = vmatprep.subr.mxu0 0.0
    %386 = vmatpush2.msra.mxu0 0.0
    %387 = vmatprep.subr.mxu0 0.0
    %388 = vmatpush2.msra.mxu0 0.0
    %389 = vmatprep.subr.mxu0 0.0
    %390 = vmatpush2.msra.mxu0 0.0
    %391 = vmatprep.subr.mxu0 0.0
    %392 = vmatpush2.msra.mxu0 0.0
    %393 = vmatprep.subr.mxu0 0.0
    %394 = vmatpush2.msra.mxu0 0.0
    %395 = vmatprep.subr.mxu0 0.0
    %396 = vmatpush2.msra.mxu0 0.0
    %397 = vmatprep.subr.mxu0 0.0
    %398 = vmatpush2.msra.mxu0 0.0
    %399 = vmatprep.subr.mxu0 0.0
    %400 = vmatpush2.msra.mxu0 0.0
    %401 = vmatprep.subr.mxu0 0.0
    %402 = vmatpush2.msra.mxu0 0.0
    %403 = vmatprep.subr.mxu0 0.0
    %404 = vmatpush2.msra.mxu0 0.0
    %405 = vmatprep.subr.mxu0 0.0
    %406 = vmatpush2.msra.mxu0 0.0
    %407 = vmatprep.subr.mxu0 0.0
    %408 = vmatpush2.msra.mxu0 0.0
    %409 = vmatprep.subr.mxu0 0.0
    %410 = vmatpush2.msra.mxu0 0.0
    %411 = vmatprep.mubr.f32.mxu0 0.0
    %412 = vmatmul.mubr.f32.gmra.mxu0 %v262
    %v413 = vpop.f32.mrf.mxu0
    %v414 = vadd.f32 0.0, %v413
    %v415 = vpop.f32.mrf.mxu0
    %416 = vmatprep.mubr.f32.mxu0 0.0
    %417 = vmatmul.mubr.f32.gmra.mxu0 %v265
    %v418 = vpop.f32.mrf.mxu0
    %v419 = vadd.f32 0.0, %v418
    %v420 = vpop.f32.mrf.mxu0
    %421 = vdwg.mxu0
    %v422 = vsel %vm182, %v414, -inf
    %v423 = vsel %vm182, %v419, -inf
    %v424 = vmax.f32 %v422, %v423
    %v425 = vrot.slane %v424, 4
    %v426 = vmax.f32 %v424, %v425
    %v427 = vrot.slane %v426, 2
    %v428 = vmax.f32 %v426, %v427
    %v429 = vrot.slane %v428, 1
    %v430 = vmax.f32 %v428, %v429
    %v431 = vsub.f32 %v414, %v430
    %v432 = vsub.f32 %v419, %v430
    %v433 = vmul.f32 %v431, 1.442695
    %v434 = vpow.pop %v433
    %v435 = vmul.f32 %v432, 1.442695
    %v436 = vpow.pop %v435
    %v437 = vsel %vm182, %v434, 0.0
    %v438 = vsel %vm182, %v436, 0.0
    %v439 = vadd.f32 %v437, %v438
    %v440 = vrot.slane %v439, 4
    %v441 = vadd.f32 %v439, %v440
    %v442 = vrot.slane %v441, 2
    %v443 = vadd.f32 %v441, %v442
    %v444 = vrot.slane %v443, 1
    %v445 = vadd.f32 %v443, %v444
    %v446 = vrcp.pop %v445
    %v447 = vmul.f32 %v434, %v446
    %v448 = vmul.f32 %v436, %v446
    %v449 = vsel %vm182, %v447, 0.0
    %450 = vadd.xlane.f32.xlu0 %v449
    %v451 = vpop.xlane.xlu0 %450
    %v452 = vsel %vm182, %v448, 0.0
    %453 = vadd.xlane.f32.xlu0 %v452
    %v454 = vpop.xlane.xlu0 %453
    %v455 = vmul.f32 %v334, %v334
    %v456 = vmul.f32 %v339, %v339
    %v457 = vsel %vm21, %v455, 0.0
    %458 = vadd.xlane.f32.xlu0 %v457
    %v459 = vpop.xlane.xlu0 %458
    %v460 = vsel %vm21, %v456, 0.0
    %461 = vadd.xlane.f32.xlu0 %v460
    %v462 = vpop.xlane.xlu0 %461
    %v463 = vrsqrt.pop %v459
    %v464 = vmul.f32 %v459, %v463
    %vm465 = vcmp.eq.f32.partialorder %v459, inf
    %v466 = vsel %vm465, %v459, %v464
    %vm467 = vcmp.eq.f32.partialorder %v459, 0.0
    %v468 = vand.u32 %v459, 2147483648
    %v469 = vsel %vm467, %v468, %v466
    %v470 = vrsqrt.pop %v462
    %v471 = vmul.f32 %v462, %v470
    %vm472 = vcmp.eq.f32.partialorder %v462, inf
    %v473 = vsel %vm472, %v462, %v471
    %vm474 = vcmp.eq.f32.partialorder %v462, 0.0
    %v475 = vand.u32 %v462, 2147483648
    %v476 = vsel %vm474, %v475, %v473
    %v477 = vmul.f32 %v451, %v469
    %v478 = vmul.f32 %v454, %v476
    %v481 = vlaneseq
    %v482 = vshrl.u32 %v481, 7
    %v483 = vsub.s32 %v243, %v482
    %v484 = vrot.slane %v477, %v483
    %v485 = vlaneseq
    %v486 = vshrl.u32 %v485, 7
    %v487 = vsub.s32 %v248, %v486
    %v488 = vrot.slane %v478, %v487
    %v489 = vsel %vm253, %v488, %v484
    %s491 = scalar_lea.vmem [#allocation2], 1
    %492 = vst.msk [vmem:[%s491] sm:$0x1] %vm256, %v489
    // Predicated region
    $region14: #{tpu_custom_call.1} parent=1 // pred_check
      _
    $region15: #{tpu_custom_call.1} parent=1 // pred_check_branch
      %494 = sbr.rel (0) target = $region17
    $region16: #{tpu_custom_call.1} parent=1 // pred_region
      %s496 = ssub.s32 32, 32
      %497 = vsyncadd [#allocation3], %s496
      %s498 = sshll.u32 [#allocation2], 4
      %s499 = int_to_ptr.vmem [resolvable:$true] %s498
      %504 = dma.vmem_to_hbm [thread:$0]  %s499, 32, %s3, [#allocation3], 16, 16, 1
    $region17: #{tpu_custom_call.1} parent=1 // pred_fallthru
      _
    // Predicated region
    $region18: #{tpu_custom_call.1} parent=1 // pred_check
      _
    $region19: #{tpu_custom_call.1} parent=1 // pred_check_branch
      %506 = sbr.rel (0) target = $region21
    $region20: #{tpu_custom_call.1} parent=1 // pred_region
      %507 = dma.done [#allocation3], 32
    $region21: #{tpu_custom_call.1} parent=1 // pred_fallthru
      _
    %508 = vsyncpa [#allocation3], 1

</llo_original>
